<compile_context>
chip_gen: v5e
topology: v5e:2x2
jax: 0.10.0
libtpu: 0.0.40
codegen_flags: <defaults>
</compile_context>

<pallas_src>
import functools

import jax
import jax.numpy as jnp
import numpy as np
from jax import lax
from jax.experimental import pallas as pl
from jax.experimental.pallas import tpu as pltpu

# fixed perception filters (same constants as the PyTorch module) — used by
# the pure-JAX reference only; the kernel uses the separable decomposition.
IDENT = jnp.array([[0.0, 0.0, 0.0], [0.0, 1.0, 0.0], [0.0, 0.0, 0.0]], jnp.float32)
LAP = jnp.array([[1.0, 2.0, 1.0], [2.0, -12.0, 2.0], [1.0, 2.0, 1.0]], jnp.float32)
SOBEL_X = jnp.array([[-1.0, 0.0, 1.0], [-2.0, 0.0, 2.0], [-1.0, 0.0, 1.0]], jnp.float32)


# ---------------------------------------------------------------------------
# Pallas kernel: one batch element per grid step (parallel axis).
#   x_ref    : (1, C, HW)    state, channels on sublanes, pixels on lanes
#   mask_ref : (1, 1, HW)    precomputed update mask
#   w1_ref   : (4, HID, C)   w1 split per perception filter (ident, sx, sy, lap)
#   b1_ref   : (HID, 1)      w1 bias (column vector, lane-broadcast)
#   w2_ref   : (C, HID)      w2 conv weight as-is
#   out_ref  : (1, C, HW)
# ---------------------------------------------------------------------------
def noise_ca_kernel(x_ref, mask_ref, w1_ref, b1_ref, w2_ref, out_ref, *, W):
    x = x_ref[0]          # (C, HW)
    mask = mask_ref[0]    # (1, HW)
    C, HW = x.shape

    # lane-index masks for the circular column shifts (j == 0 / j == W-1)
    col = lax.broadcasted_iota(jnp.int32, (C, HW), 1) % W
    first_col = col == 0
    last_col = col == (W - 1)

    def left(v):
        # v[:, i, (j-1) mod W] : flat roll by +1, fixed up at column 0
        return jnp.where(first_col,
                         jnp.roll(v, 1 - W, axis=-1),
                         jnp.roll(v, 1, axis=-1))

    def right(v):
        # v[:, i, (j+1) mod W] : flat roll by -1, fixed up at column W-1
        return jnp.where(last_col,
                         jnp.roll(v, W - 1, axis=-1),
                         jnp.roll(v, -1, axis=-1))

    # circular row shifts: flat roll by +/-W is exact (wraps over rows, and the
    # top<->bottom wrap is the circular H boundary).
    u = jnp.roll(x, W, axis=-1)    # x[i-1, j]
    d = jnp.roll(x, -W, axis=-1)   # x[i+1, j]

    # separable stencils
    s = u + 2.0 * x + d            # [1,2,1] along H
    t = d - u                      # [-1,0,1] along H
    sl, sr = left(s), right(s)
    tl, tr = left(t), right(t)
    sx = sr - sl                   # sobel_x
    sy = tl + 2.0 * t + tr         # sobel_x.T
    lap = sl + sr + 2.0 * s - 16.0 * x

    # 1x1 convs as transposed matmuls on the MXU: (HID,C)@(C,HW) -> (HID,HW)
    h = jnp.dot(w1_ref[0], x, preferred_element_type=jnp.float32)
    h = h + jnp.dot(w1_ref[1], sx, preferred_element_type=jnp.float32)
    h = h + jnp.dot(w1_ref[2], sy, preferred_element_type=jnp.float32)
    h = h + jnp.dot(w1_ref[3], lap, preferred_element_type=jnp.float32)
    h = jnp.maximum(h + b1_ref[...], 0.0)                       # relu(w1(perc))
    y = jnp.dot(w2_ref[...], h, preferred_element_type=jnp.float32)  # (C, HW)

    out_ref[0] = x + y * mask


def prepare_weights(w1, b1, w2):
    """One-time weight re-layout (hoist out of the rollout loop).

    w1: (HID, 4C) with input channel order c*4 + f  (f in ident, sx, sy, lap)
    b1: (HID,)
    w2: (C, HID)
    """
    HID, C4 = w1.shape
    C = C4 // 4
    w1_split = w1.reshape(HID, C, 4).transpose(2, 0, 1)   # (4, HID, C)
    b1_col = b1.reshape(HID, 1)
    return w1_split, b1_col, w2


def noise_ca_forward(x_nchw, mask_nchw, w1_split, b1_col, w2):
    """x_nchw: (B, C, H, W); mask_nchw: (B, 1, H, W); weights from prepare_weights."""
    B, C, H, W = x_nchw.shape
    HW = H * W
    HID = w2.shape[1]

    # NCHW -> (B, C, H*W) is a pure reshape (free), no transpose.
    x = x_nchw.reshape(B, C, HW)
    mask = mask_nchw.reshape(B, 1, HW)

    out = pl.pallas_call(
        functools.partial(noise_ca_kernel, W=W),
        out_shape=jax.ShapeDtypeStruct((B, C, HW), x.dtype),
        grid_spec=pltpu.PrefetchScalarGridSpec(
            num_scalar_prefetch=0,
            grid=(B,),
            in_specs=[
                pl.BlockSpec((1, C, HW), lambda b: (b, 0, 0)),
                pl.BlockSpec((1, 1, HW), lambda b: (b, 0, 0)),
                pl.BlockSpec((4, HID, C), lambda b: (0, 0, 0)),
                pl.BlockSpec((HID, 1), lambda b: (0, 0)),
                pl.BlockSpec((C, HID), lambda b: (0, 0)),
            ],
            out_specs=pl.BlockSpec((1, C, HW), lambda b: (b, 0, 0)),
        ),
        compiler_params=pltpu.CompilerParams(dimension_semantics=("parallel",)),
    )(x, mask, w1_split, b1_col, w2)

    return out.reshape(B, C, H, W)


# ---------------------------------------------------------------------------
# Pure-JAX reference (mirrors the PyTorch code path: circular pad + conv2d)
# ---------------------------------------------------------------------------
def perception_ref(x):  # x: (B, C, H, W)
    b, c, h, w = x.shape
    filters = jnp.stack([IDENT, SOBEL_X, SOBEL_X.T, LAP])      # (4, 3, 3)
    y = x.reshape(b * c, 1, h, w)
    y = jnp.pad(y, ((0, 0), (0, 0), (1, 1), (1, 1)), mode="wrap")
    out = jax.lax.conv_general_dilated(
        y, filters[:, None], (1, 1), "VALID",
        dimension_numbers=("NCHW", "OIHW", "NCHW"))
    return out.reshape(b, c * 4, h, w)            # channel order: c*4 + f


def forward_ref(x, mask, w1, b1, w2):
    p = perception_ref(x)
    h1 = jnp.einsum("bihw,oi->bohw", p, w1) + b1[None, :, None, None]
    h1 = jnp.maximum(h1, 0.0)
    y = jnp.einsum("bihw,oi->bohw", h1, w2)
    return x + y * mask


if __name__ == "__main__":
    B, C, H, W, HID = 2, 12, 16, 16, 96     # chn=12, hidden_n=96 as in __init__
    noise_level = 0.1
    update_rate = 0.5

    key = jax.random.PRNGKey(0)
    k1, k2, k3, k4, k5 = jax.random.split(key, 5)

    # seed() equivalent: (rand - 0.5) * noise_level
    x = (jax.random.uniform(k1, (B, C, H, W), jnp.float32) - 0.5) * noise_level
    w1 = jax.random.normal(k2, (HID, 4 * C), jnp.float32) * 0.1
    b1 = jax.random.normal(k3, (HID,), jnp.float32) * 0.1
    # NOTE: NoiseCA.__init__ zeroes w2; use a nonzero deterministic init here so
    # the kernel hot path is actually exercised (shapes identical).
    w2 = jax.random.normal(k4, (C, HID), jnp.float32) * 0.1
    # update mask: (torch.rand(b,1,h,w) + update_rate).floor(), generated in glue
    mask = jnp.floor(jax.random.uniform(k5, (B, 1, H, W), jnp.float32) + update_rate)

    # one-time weight layout prep (kept out of the per-step hot path)
    w1_split, b1_col, w2_p = prepare_weights(w1, b1, w2)

    out = noise_ca_forward(x, mask, w1_split, b1_col, w2_p)
    out = jax.block_until_ready(out)

    ref = forward_ref(x, mask, w1, b1, w2)
    np.testing.assert_allclose(np.asarray(out), np.asarray(ref), rtol=1e-4, atol=3e-5)

    print("KERNEL_OK")
</pallas_src>

<mosaic_0001>
module attributes {stable_mosaic.version = 11 : i64} {
  func.func @noise_ca_kernel(%arg0: i32, %arg1: memref<1x12x256xf32, #tpu.memory_space<vmem>>, %arg2: memref<1x1x256xf32, #tpu.memory_space<vmem>>, %arg3: memref<4x96x12xf32, #tpu.memory_space<vmem>>, %arg4: memref<96x1xf32, #tpu.memory_space<vmem>>, %arg5: memref<12x96xf32, #tpu.memory_space<vmem>>, %arg6: memref<1x12x256xf32, #tpu.memory_space<vmem>>) attributes {dimension_semantics = [#tpu.dimension_semantics<parallel>], iteration_bounds = array<i64: 2>, scalar_prefetch = 0 : i64, scratch_operands = 0 : i64, tpu.core_type = #tpu.core_type<tc>, window_params = [{transform_indices = @transform_0, window_bounds = array<i64: 1, 12, 256>}, {transform_indices = @transform_1, window_bounds = array<i64: 1, 1, 256>}, {pipeline_mode = #tpu.pipeline_mode<synchronous>, transform_indices = @transform_2, window_bounds = array<i64: 4, 96, 12>}, {pipeline_mode = #tpu.pipeline_mode<synchronous>, transform_indices = @transform_3, window_bounds = array<i64: 96, 1>}, {pipeline_mode = #tpu.pipeline_mode<synchronous>, transform_indices = @transform_4, window_bounds = array<i64: 12, 96>}, {transform_indices = @transform_5, window_bounds = array<i64: 1, 12, 256>}]} {
    %c0 = arith.constant 0 : index
    %c0_0 = arith.constant 0 : index
    %c0_1 = arith.constant 0 : index
    %0 = vector.load %arg1[%c0, %c0_0, %c0_1] : memref<1x12x256xf32, #tpu.memory_space<vmem>>, vector<1x12x256xf32>
    %1 = vector.shape_cast %0 : vector<1x12x256xf32> to vector<12x256xf32>
    %c0_2 = arith.constant 0 : index
    %c0_3 = arith.constant 0 : index
    %c0_4 = arith.constant 0 : index
    %2 = vector.load %arg2[%c0_2, %c0_3, %c0_4] : memref<1x1x256xf32, #tpu.memory_space<vmem>>, vector<1x1x256xf32>
    %3 = vector.shape_cast %2 : vector<1x1x256xf32> to vector<1x256xf32>
    %4 = tpu.iota {dimensions = array<i32: 1>} : vector<12x256xi32>
    %c16_i32 = arith.constant 16 : i32
    %c0_i32 = arith.constant 0 : i32
    %5 = arith.cmpi eq, %c16_i32, %c0_i32 : i32
    %c1_i32 = arith.constant 1 : i32
    %6 = arith.select %5, %c1_i32, %c16_i32 : i32
    %7 = vector.broadcast %6 : i32 to vector<12x256xi32>
    %8 = arith.remsi %4, %7 : vector<12x256xi32>
    %c0_i32_5 = arith.constant 0 : i32
    %9 = vector.broadcast %c0_i32_5 : i32 to vector<12x256xi32>
    %10 = arith.cmpi ne, %8, %9 : vector<12x256xi32>
    %c0_i32_6 = arith.constant 0 : i32
    %11 = vector.broadcast %c0_i32_6 : i32 to vector<12x256xi32>
    %12 = arith.cmpi slt, %8, %11 : vector<12x256xi32>
    %c0_i32_7 = arith.constant 0 : i32
    %13 = arith.cmpi slt, %6, %c0_i32_7 : i32
    %14 = vector.broadcast %13 : i1 to vector<12x256xi1>
    %15 = vector.broadcast %14 : vector<12x256xi1> to vector<12x256xi1>
    %16 = arith.xori %12, %15 : vector<12x256xi1>
    %17 = arith.andi %16, %10 : vector<12x256xi1>
    %18 = vector.broadcast %6 : i32 to vector<12x256xi32>
    %19 = arith.addi %8, %18 : vector<12x256xi32>
    %20 = arith.select %17, %19, %8 : vector<12x256xi1>, vector<12x256xi32>
    %c0_i32_8 = arith.constant 0 : i32
    %21 = vector.broadcast %c0_i32_8 : i32 to vector<12x256xi32>
    %22 = arith.cmpi eq, %20, %21 : vector<12x256xi32>
    %c15_i32 = arith.constant 15 : i32
    %23 = vector.broadcast %c15_i32 : i32 to vector<12x256xi32>
    %24 = arith.cmpi eq, %20, %23 : vector<12x256xi32>
    %25 = vector.extract_strided_slice %1 {offsets = [0, 240], sizes = [12, 16], strides = [1, 1]} : vector<12x256xf32> to vector<12x16xf32>
    %26 = vector.extract_strided_slice %1 {offsets = [0, 0], sizes = [12, 240], strides = [1, 1]} : vector<12x256xf32> to vector<12x240xf32>
    %27 = tpu.concatenate %25, %26 in 1 : vector<12x16xf32>, vector<12x240xf32> -> vector<12x256xf32>
    %28 = vector.extract_strided_slice %1 {offsets = [0, 16], sizes = [12, 240], strides = [1, 1]} : vector<12x256xf32> to vector<12x240xf32>
    %29 = vector.extract_strided_slice %1 {offsets = [0, 0], sizes = [12, 16], strides = [1, 1]} : vector<12x256xf32> to vector<12x16xf32>
    %30 = tpu.concatenate %28, %29 in 1 : vector<12x240xf32>, vector<12x16xf32> -> vector<12x256xf32>
    %cst = arith.constant 2.000000e+00 : f32
    %31 = vector.broadcast %cst : f32 to vector<12x256xf32>
    %32 = arith.mulf %31, %1 : vector<12x256xf32>
    %33 = arith.addf %27, %32 : vector<12x256xf32>
    %34 = arith.addf %33, %30 : vector<12x256xf32>
    %35 = arith.subf %30, %27 : vector<12x256xf32>
    %36 = vector.extract_strided_slice %34 {offsets = [0, 15], sizes = [12, 241], strides = [1, 1]} : vector<12x256xf32> to vector<12x241xf32>
    %37 = vector.extract_strided_slice %34 {offsets = [0, 0], sizes = [12, 15], strides = [1, 1]} : vector<12x256xf32> to vector<12x15xf32>
    %38 = tpu.concatenate %36, %37 in 1 : vector<12x241xf32>, vector<12x15xf32> -> vector<12x256xf32>
    %39 = vector.extract_strided_slice %34 {offsets = [0, 255], sizes = [12, 1], strides = [1, 1]} : vector<12x256xf32> to vector<12x1xf32>
    %40 = vector.extract_strided_slice %34 {offsets = [0, 0], sizes = [12, 255], strides = [1, 1]} : vector<12x256xf32> to vector<12x255xf32>
    %41 = tpu.concatenate %39, %40 in 1 : vector<12x1xf32>, vector<12x255xf32> -> vector<12x256xf32>
    %42 = arith.select %22, %38, %41 : vector<12x256xi1>, vector<12x256xf32>
    %43 = vector.extract_strided_slice %34 {offsets = [0, 241], sizes = [12, 15], strides = [1, 1]} : vector<12x256xf32> to vector<12x15xf32>
    %44 = vector.extract_strided_slice %34 {offsets = [0, 0], sizes = [12, 241], strides = [1, 1]} : vector<12x256xf32> to vector<12x241xf32>
    %45 = tpu.concatenate %43, %44 in 1 : vector<12x15xf32>, vector<12x241xf32> -> vector<12x256xf32>
    %46 = vector.extract_strided_slice %34 {offsets = [0, 1], sizes = [12, 255], strides = [1, 1]} : vector<12x256xf32> to vector<12x255xf32>
    %47 = vector.extract_strided_slice %34 {offsets = [0, 0], sizes = [12, 1], strides = [1, 1]} : vector<12x256xf32> to vector<12x1xf32>
    %48 = tpu.concatenate %46, %47 in 1 : vector<12x255xf32>, vector<12x1xf32> -> vector<12x256xf32>
    %49 = arith.select %24, %45, %48 : vector<12x256xi1>, vector<12x256xf32>
    %50 = vector.extract_strided_slice %35 {offsets = [0, 15], sizes = [12, 241], strides = [1, 1]} : vector<12x256xf32> to vector<12x241xf32>
    %51 = vector.extract_strided_slice %35 {offsets = [0, 0], sizes = [12, 15], strides = [1, 1]} : vector<12x256xf32> to vector<12x15xf32>
    %52 = tpu.concatenate %50, %51 in 1 : vector<12x241xf32>, vector<12x15xf32> -> vector<12x256xf32>
    %53 = vector.extract_strided_slice %35 {offsets = [0, 255], sizes = [12, 1], strides = [1, 1]} : vector<12x256xf32> to vector<12x1xf32>
    %54 = vector.extract_strided_slice %35 {offsets = [0, 0], sizes = [12, 255], strides = [1, 1]} : vector<12x256xf32> to vector<12x255xf32>
    %55 = tpu.concatenate %53, %54 in 1 : vector<12x1xf32>, vector<12x255xf32> -> vector<12x256xf32>
    %56 = arith.select %22, %52, %55 : vector<12x256xi1>, vector<12x256xf32>
    %57 = vector.extract_strided_slice %35 {offsets = [0, 241], sizes = [12, 15], strides = [1, 1]} : vector<12x256xf32> to vector<12x15xf32>
    %58 = vector.extract_strided_slice %35 {offsets = [0, 0], sizes = [12, 241], strides = [1, 1]} : vector<12x256xf32> to vector<12x241xf32>
    %59 = tpu.concatenate %57, %58 in 1 : vector<12x15xf32>, vector<12x241xf32> -> vector<12x256xf32>
    %60 = vector.extract_strided_slice %35 {offsets = [0, 1], sizes = [12, 255], strides = [1, 1]} : vector<12x256xf32> to vector<12x255xf32>
    %61 = vector.extract_strided_slice %35 {offsets = [0, 0], sizes = [12, 1], strides = [1, 1]} : vector<12x256xf32> to vector<12x1xf32>
    %62 = tpu.concatenate %60, %61 in 1 : vector<12x255xf32>, vector<12x1xf32> -> vector<12x256xf32>
    %63 = arith.select %24, %59, %62 : vector<12x256xi1>, vector<12x256xf32>
    %64 = arith.subf %49, %42 : vector<12x256xf32>
    %cst_9 = arith.constant 2.000000e+00 : f32
    %65 = vector.broadcast %cst_9 : f32 to vector<12x256xf32>
    %66 = arith.mulf %65, %35 : vector<12x256xf32>
    %67 = arith.addf %56, %66 : vector<12x256xf32>
    %68 = arith.addf %67, %63 : vector<12x256xf32>
    %69 = arith.addf %42, %49 : vector<12x256xf32>
    %cst_10 = arith.constant 2.000000e+00 : f32
    %70 = vector.broadcast %cst_10 : f32 to vector<12x256xf32>
    %71 = arith.mulf %70, %34 : vector<12x256xf32>
    %72 = arith.addf %69, %71 : vector<12x256xf32>
    %cst_11 = arith.constant 1.600000e+01 : f32
    %73 = vector.broadcast %cst_11 : f32 to vector<12x256xf32>
    %74 = arith.mulf %73, %1 : vector<12x256xf32>
    %75 = arith.subf %72, %74 : vector<12x256xf32>
    %c0_12 = arith.constant 0 : index
    %c0_13 = arith.constant 0 : index
    %c0_14 = arith.constant 0 : index
    %76 = vector.load %arg3[%c0_12, %c0_13, %c0_14] : memref<4x96x12xf32, #tpu.memory_space<vmem>>, vector<1x96x12xf32>
    %77 = vector.shape_cast %76 : vector<1x96x12xf32> to vector<96x12xf32>
    %cst_15 = arith.constant dense<0.000000e+00> : vector<96x256xf32>
    %78 = tpu.matmul %77, %1, %cst_15 {dimension_numbers = #tpu.dot_dimension_numbers<[1], [0], [0], [1], [0, 0, 1, 1], [], []>} : vector<96x12xf32>, vector<12x256xf32>, vector<96x256xf32> -> vector<96x256xf32>
    %c1 = arith.constant 1 : index
    %c0_16 = arith.constant 0 : index
    %c0_17 = arith.constant 0 : index
    %79 = vector.load %arg3[%c1, %c0_16, %c0_17] : memref<4x96x12xf32, #tpu.memory_space<vmem>>, vector<1x96x12xf32>
    %80 = vector.shape_cast %79 : vector<1x96x12xf32> to vector<96x12xf32>
    %cst_18 = arith.constant dense<0.000000e+00> : vector<96x256xf32>
    %81 = tpu.matmul %80, %64, %cst_18 {dimension_numbers = #tpu.dot_dimension_numbers<[1], [0], [0], [1], [0, 0, 1, 1], [], []>} : vector<96x12xf32>, vector<12x256xf32>, vector<96x256xf32> -> vector<96x256xf32>
    %82 = arith.addf %78, %81 : vector<96x256xf32>
    %c2 = arith.constant 2 : index
    %c0_19 = arith.constant 0 : index
    %c0_20 = arith.constant 0 : index
    %83 = vector.load %arg3[%c2, %c0_19, %c0_20] : memref<4x96x12xf32, #tpu.memory_space<vmem>>, vector<1x96x12xf32>
    %84 = vector.shape_cast %83 : vector<1x96x12xf32> to vector<96x12xf32>
    %cst_21 = arith.constant dense<0.000000e+00> : vector<96x256xf32>
    %85 = tpu.matmul %84, %68, %cst_21 {dimension_numbers = #tpu.dot_dimension_numbers<[1], [0], [0], [1], [0, 0, 1, 1], [], []>} : vector<96x12xf32>, vector<12x256xf32>, vector<96x256xf32> -> vector<96x256xf32>
    %86 = arith.addf %82, %85 : vector<96x256xf32>
    %c3 = arith.constant 3 : index
    %c0_22 = arith.constant 0 : index
    %c0_23 = arith.constant 0 : index
    %87 = vector.load %arg3[%c3, %c0_22, %c0_23] : memref<4x96x12xf32, #tpu.memory_space<vmem>>, vector<1x96x12xf32>
    %88 = vector.shape_cast %87 : vector<1x96x12xf32> to vector<96x12xf32>
    %cst_24 = arith.constant dense<0.000000e+00> : vector<96x256xf32>
    %89 = tpu.matmul %88, %75, %cst_24 {dimension_numbers = #tpu.dot_dimension_numbers<[1], [0], [0], [1], [0, 0, 1, 1], [], []>} : vector<96x12xf32>, vector<12x256xf32>, vector<96x256xf32> -> vector<96x256xf32>
    %90 = arith.addf %86, %89 : vector<96x256xf32>
    %c0_25 = arith.constant 0 : index
    %c0_26 = arith.constant 0 : index
    %91 = vector.load %arg4[%c0_25, %c0_26] : memref<96x1xf32, #tpu.memory_space<vmem>>, vector<96x1xf32>
    %92 = vector.broadcast %91 : vector<96x1xf32> to vector<96x256xf32>
    %93 = arith.addf %90, %92 : vector<96x256xf32>
    %cst_27 = arith.constant 0.000000e+00 : f32
    %94 = vector.broadcast %cst_27 : f32 to vector<96x256xf32>
    %95 = arith.maximumf %93, %94 : vector<96x256xf32>
    %c0_28 = arith.constant 0 : index
    %c0_29 = arith.constant 0 : index
    %96 = vector.load %arg5[%c0_28, %c0_29] : memref<12x96xf32, #tpu.memory_space<vmem>>, vector<12x96xf32>
    %cst_30 = arith.constant dense<0.000000e+00> : vector<12x256xf32>
    %97 = tpu.matmul %96, %95, %cst_30 {dimension_numbers = #tpu.dot_dimension_numbers<[1], [0], [0], [1], [0, 0, 1, 1], [], []>} : vector<12x96xf32>, vector<96x256xf32>, vector<12x256xf32> -> vector<12x256xf32>
    %98 = vector.broadcast %3 : vector<1x256xf32> to vector<12x256xf32>
    %99 = arith.mulf %97, %98 : vector<12x256xf32>
    %100 = arith.addf %1, %99 : vector<12x256xf32>
    %c0_31 = arith.constant 0 : index
    %c0_32 = arith.constant 0 : index
    %c0_33 = arith.constant 0 : index
    %101 = vector.load %arg6[%c0_31, %c0_32, %c0_33] : memref<1x12x256xf32, #tpu.memory_space<vmem>>, vector<1x12x256xf32>
    %102 = vector.shape_cast %101 : vector<1x12x256xf32> to vector<12x256xf32>
    %103 = vector.shape_cast %100 : vector<12x256xf32> to vector<1x12x256xf32>
    tpu.vector_store %arg6[%c0_31, %c0_32, %c0_33], %103 {strides = array<i32>} : memref<1x12x256xf32, #tpu.memory_space<vmem>>, vector<1x12x256xf32>,
    return
  }
  func.func @transform_0(%arg0: i32) -> (i32, i32, i32) {
    %c0_i32 = arith.constant 0 : i32
    %c0_i32_0 = arith.constant 0 : i32
    %c0_i32_1 = arith.constant 0 : i32
    return %arg0, %c0_i32, %c0_i32_0 : i32, i32, i32
  }
  func.func @transform_1(%arg0: i32) -> (i32, i32, i32) {
    %c0_i32 = arith.constant 0 : i32
    %c0_i32_0 = arith.constant 0 : i32
    %c0_i32_1 = arith.constant 0 : i32
    return %arg0, %c0_i32, %c0_i32_0 : i32, i32, i32
  }
  func.func @transform_2(%arg0: i32) -> (i32, i32, i32) {
    %c0_i32 = arith.constant 0 : i32
    %c0_i32_0 = arith.constant 0 : i32
    %c0_i32_1 = arith.constant 0 : i32
    %c0_i32_2 = arith.constant 0 : i32
    return %c0_i32, %c0_i32_0, %c0_i32_1 : i32, i32, i32
  }
  func.func @transform_3(%arg0: i32) -> (i32, i32) {
    %c0_i32 = arith.constant 0 : i32
    %c0_i32_0 = arith.constant 0 : i32
    %c0_i32_1 = arith.constant 0 : i32
    return %c0_i32, %c0_i32_0 : i32, i32
  }
  func.func @transform_4(%arg0: i32) -> (i32, i32) {
    %c0_i32 = arith.constant 0 : i32
    %c0_i32_0 = arith.constant 0 : i32
    %c0_i32_1 = arith.constant 0 : i32
    return %c0_i32, %c0_i32_0 : i32, i32
  }
  func.func @transform_5(%arg0: i32) -> (i32, i32, i32) {
    %c0_i32 = arith.constant 0 : i32
    %c0_i32_0 = arith.constant 0 : i32
    %c0_i32_1 = arith.constant 0 : i32
    return %arg0, %c0_i32, %c0_i32_0 : i32, i32, i32
  }
}

</mosaic_0001>

<llo_original>
// kernel: tpu_custom_call.1
$region0: #{tpu_custom_call.1}
  #allocation0 [shape = 'u32[]', space=smem, size = 0x4, offset = 0x4, fixed_abs, tag = 'smem constant byte address 0x4 - core index']
  #allocation1 [shape = 'u32[72,128]{1,0:T(1,128)}', space=vmem, size = 0x9000, scoped, tag = 'internal scratch']
  %s0 = inlined_call_operand.vmem [shape: f32[2,12,256], index: 0, kind: input, shape index: {}]
  %s1 = inlined_call_operand.vmem [shape: f32[2,1,256], index: 1, kind: input, shape index: {}]
  %s2 = inlined_call_operand.vmem [shape: f32[4,96,12], index: 2, kind: input, shape index: {}]
  %s3 = inlined_call_operand.vmem [shape: f32[96,1], index: 3, kind: input, shape index: {}]
  %s4 = inlined_call_operand.vmem [shape: f32[12,96], index: 4, kind: input, shape index: {}]
  %s5 = inlined_call_operand.vmem [shape: f32[2,12,256], index: 5, kind: output, shape index: {}]
  %s6 = sld [smem:[#allocation0]]
  $region53: #{tpu_custom_call.1} parent=0
    _
  %s8 = ssub.s32 1, %s6
  %s9 = scalar_select 0, %s8, %s6
  loop: start=0, step=1, limit=4
  $region2: #{tpu_custom_call.1} parent=0 // loop_pre_header
    _
  $region3: #{tpu_custom_call.1} parent=0 // loop_header
    %s11 = sphi 0, %s15
    %p12 = scmp.ge.s32.totalorder %s11, 4
    %s21 = sphi 0, %s23
    %s24 = sphi 0, %s21
    %s25 = sphi 0, %s24
    %s41 = sphi 0, %s25
    %s47 = sphi 0, %s49
    %s50 = sphi 0, %s47
    %s51 = sphi 0, %s50
    %s67 = sphi 0, %s51
    %s71 = sphi 0, %s71
    %s73 = sphi 0, %s71
    %s74 = sphi 0, %s73
    %s88 = sphi 0, %s74
    %s92 = sphi 0, %s92
    %s94 = sphi 0, %s92
    %s95 = sphi 0, %s94
    %s109 = sphi 0, %s95
    %s113 = sphi 0, %s113
    %s115 = sphi 0, %s113
    %s116 = sphi 0, %s115
    %s130 = sphi 0, %s116
    %s136 = sphi 0, %s138
    %s139 = sphi 0, %s136
    %s140 = sphi 0, %s139
    %s156 = sphi 0, %s140
  $region4: #{tpu_custom_call.1} parent=0 // loop_header_branch
    %14 = sbr.rel (%p12) target = $region8
  $region5: #{tpu_custom_call.1} parent=0 // loop_body
    %s16 = ssub.s32 %s11, 1
    %s17 = ssub.s32 %s11, 2
    %s18 = sadd.s32 %s11, 1
    %s19 = ssub.s32 %s11, %s18
    %p20 = scmp.eq.s32.totalorder %s19, 0
    %s22 = sadd.s32 %s21, 1
    %s23 = scalar_select %p20, %s21, %s22
    %p26 = pneg %p20
    %p27 = scmp.eq.s32.totalorder %s11, 1
    %p28 = por %p26, %p27
    %p29 = scmp.ne.s32.totalorder %s21, %s24
    %p30 = scmp.eq.s32.totalorder %s11, 0
    %p31 = por %p29, %p30
    %p32 = scmp.ne.s32.totalorder %s21, %s24
    %p33 = scmp.eq.s32.totalorder %s16, 1
    %p34 = por %p32, %p33
    %p35 = scmp.ne.s32.totalorder %s24, %s25
    %p36 = scmp.eq.s32.totalorder %s16, 0
    %p37 = por %p35, %p36
    %p38 = scmp.ne.s32.totalorder %s24, %s25
    %p39 = scmp.eq.s32.totalorder %s17, 1
    %p40 = por %p38, %p39
    %p42 = scmp.ne.s32.totalorder %s25, %s41
    %p43 = scmp.eq.s32.totalorder %s17, 0
    %p44 = por %p42, %p43
    %s45 = ssub.s32 %s11, %s18
    %p46 = scmp.eq.s32.totalorder %s45, 0
    %s48 = sadd.s32 %s47, 1
    %s49 = scalar_select %p46, %s47, %s48
    %p52 = pneg %p46
    %p53 = scmp.eq.s32.totalorder %s11, 1
    %p54 = por %p52, %p53
    %p55 = scmp.ne.s32.totalorder %s47, %s50
    %p56 = scmp.eq.s32.totalorder %s11, 0
    %p57 = por %p55, %p56
    %p58 = scmp.ne.s32.totalorder %s47, %s50
    %p59 = scmp.eq.s32.totalorder %s16, 1
    %p60 = por %p58, %p59
    %p61 = scmp.ne.s32.totalorder %s50, %s51
    %p62 = scmp.eq.s32.totalorder %s16, 0
    %p63 = por %p61, %p62
    %p64 = scmp.ne.s32.totalorder %s50, %s51
    %p65 = scmp.eq.s32.totalorder %s17, 1
    %p66 = por %p64, %p65
    %p68 = scmp.ne.s32.totalorder %s51, %s67
    %p69 = scmp.eq.s32.totalorder %s17, 0
    %p70 = por %p68, %p69
    %s72 = sadd.s32 %s71, 1
    %p75 = scmp.eq.s32.totalorder %s11, 1
    %p76 = scmp.ne.s32.totalorder %s71, %s73
    %p77 = scmp.eq.s32.totalorder %s11, 0
    %p78 = por %p76, %p77
    %p79 = scmp.ne.s32.totalorder %s71, %s73
    %p80 = scmp.eq.s32.totalorder %s16, 1
    %p81 = por %p79, %p80
    %p82 = scmp.ne.s32.totalorder %s73, %s74
    %p83 = scmp.eq.s32.totalorder %s16, 0
    %p84 = por %p82, %p83
    %p85 = scmp.ne.s32.totalorder %s73, %s74
    %p86 = scmp.eq.s32.totalorder %s17, 1
    %p87 = por %p85, %p86
    %p89 = scmp.ne.s32.totalorder %s74, %s88
    %p90 = scmp.eq.s32.totalorder %s17, 0
    %p91 = por %p89, %p90
    %s93 = sadd.s32 %s92, 1
    %p96 = scmp.eq.s32.totalorder %s11, 1
    %p97 = scmp.ne.s32.totalorder %s92, %s94
    %p98 = scmp.eq.s32.totalorder %s11, 0
    %p99 = por %p97, %p98
    %p100 = scmp.ne.s32.totalorder %s92, %s94
    %p101 = scmp.eq.s32.totalorder %s16, 1
    %p102 = por %p100, %p101
    %p103 = scmp.ne.s32.totalorder %s94, %s95
    %p104 = scmp.eq.s32.totalorder %s16, 0
    %p105 = por %p103, %p104
    %p106 = scmp.ne.s32.totalorder %s94, %s95
    %p107 = scmp.eq.s32.totalorder %s17, 1
    %p108 = por %p106, %p107
    %p110 = scmp.ne.s32.totalorder %s95, %s109
    %p111 = scmp.eq.s32.totalorder %s17, 0
    %p112 = por %p110, %p111
    %s114 = sadd.s32 %s113, 1
    %p117 = scmp.eq.s32.totalorder %s11, 1
    %p118 = scmp.ne.s32.totalorder %s113, %s115
    %p119 = scmp.eq.s32.totalorder %s11, 0
    %p120 = por %p118, %p119
    %p121 = scmp.ne.s32.totalorder %s113, %s115
    %p122 = scmp.eq.s32.totalorder %s16, 1
    %p123 = por %p121, %p122
    %p124 = scmp.ne.s32.totalorder %s115, %s116
    %p125 = scmp.eq.s32.totalorder %s16, 0
    %p126 = por %p124, %p125
    %p127 = scmp.ne.s32.totalorder %s115, %s116
    %p128 = scmp.eq.s32.totalorder %s17, 1
    %p129 = por %p127, %p128
    %p131 = scmp.ne.s32.totalorder %s116, %s130
    %p132 = scmp.eq.s32.totalorder %s17, 0
    %p133 = por %p131, %p132
    %s134 = ssub.s32 %s11, %s18
    %p135 = scmp.eq.s32.totalorder %s134, 0
    %s137 = sadd.s32 %s136, 1
    %s138 = scalar_select %p135, %s136, %s137
    %p141 = pneg %p135
    %p142 = scmp.eq.s32.totalorder %s11, 1
    %p143 = por %p141, %p142
    %p144 = scmp.ne.s32.totalorder %s136, %s139
    %p145 = scmp.eq.s32.totalorder %s11, 0
    %p146 = por %p144, %p145
    %p147 = scmp.ne.s32.totalorder %s136, %s139
    %p148 = scmp.eq.s32.totalorder %s16, 1
    %p149 = por %p147, %p148
    %p150 = scmp.ne.s32.totalorder %s139, %s140
    %p151 = scmp.eq.s32.totalorder %s16, 0
    %p152 = por %p150, %p151
    %p153 = scmp.ne.s32.totalorder %s139, %s140
    %p154 = scmp.eq.s32.totalorder %s17, 1
    %p155 = por %p153, %p154
    %p157 = scmp.ne.s32.totalorder %s140, %s156
    %p158 = scmp.eq.s32.totalorder %s17, 0
    %p159 = por %p157, %p158
    %p160 = scmp.le.s32.totalorder 1, %s11
    %p161 = scmp.lt.s32.totalorder %s11, 3
    %p162 = pnand %p160, %p161
    %p163 = pneg %p162
    // Predicated region
    $region9: #{tpu_custom_call.1} parent=5 // pred_check
      _
    $region10: #{tpu_custom_call.1} parent=5 // pred_check_branch
      %165 = sbr.rel (%p162) target = $region12
    $region11: #{tpu_custom_call.1} parent=5 // pred_region
      %s166 = ssub.s32 %s11, 1
      // Predicated region
      $region13: #{tpu_custom_call.1} parent=11 // pred_check
        %p167 = pneg %p84
      $region14: #{tpu_custom_call.1} parent=11 // pred_check_branch
        %169 = sbr.rel (%p167) target = $region16
      $region15: #{tpu_custom_call.1} parent=11 // pred_region
        _
      $region16: #{tpu_custom_call.1} parent=11 // pred_fallthru
        _
      // Predicated region
      $region17: #{tpu_custom_call.1} parent=11 // pred_check
        %p170 = pneg %p105
      $region18: #{tpu_custom_call.1} parent=11 // pred_check_branch
        %172 = sbr.rel (%p170) target = $region20
      $region19: #{tpu_custom_call.1} parent=11 // pred_region
        _
      $region20: #{tpu_custom_call.1} parent=11 // pred_fallthru
        _
      // Predicated region
      $region21: #{tpu_custom_call.1} parent=11 // pred_check
        %p173 = pneg %p126
      $region22: #{tpu_custom_call.1} parent=11 // pred_check_branch
        %175 = sbr.rel (%p173) target = $region24
      $region23: #{tpu_custom_call.1} parent=11 // pred_region
        _
      $region24: #{tpu_custom_call.1} parent=11 // pred_fallthru
        _
    $region12: #{tpu_custom_call.1} parent=5 // pred_fallthru
      _
    %p176 = scmp.lt.s32.totalorder %s11, 2
    // Predicated region
    $region25: #{tpu_custom_call.1} parent=5 // pred_check
      %p177 = pneg %p176
    $region26: #{tpu_custom_call.1} parent=5 // pred_check_branch
      %179 = sbr.rel (%p177) target = $region28
    $region27: #{tpu_custom_call.1} parent=5 // pred_region
      // Predicated region
      $region29: #{tpu_custom_call.1} parent=27 // pred_check
        %p180 = pneg %p31
      $region30: #{tpu_custom_call.1} parent=27 // pred_check_branch
        %182 = sbr.rel (%p180) target = $region32
      $region31: #{tpu_custom_call.1} parent=27 // pred_region
        %p183 = scmp.lt.s32.totalorder %s11, 1
        %s184 = scalar_select %p183, %s11, 1
        %s185 = smul.addr %s184, 4
        %s186 = smul.addr %s185, 8
        %s187 = scalar_lea.vmem %s0, %s186
      $region32: #{tpu_custom_call.1} parent=27 // pred_fallthru
        _
      // Predicated region
      $region33: #{tpu_custom_call.1} parent=27 // pred_check
        %p188 = pneg %p57
      $region34: #{tpu_custom_call.1} parent=27 // pred_check_branch
        %190 = sbr.rel (%p188) target = $region36
      $region35: #{tpu_custom_call.1} parent=27 // pred_region
        %p191 = scmp.lt.s32.totalorder %s11, 1
        %s192 = scalar_select %p191, %s11, 1
        %s193 = smul.addr %s192, 2
        %s194 = scalar_lea.vmem %s1, %s193
      $region36: #{tpu_custom_call.1} parent=27 // pred_fallthru
        _
    $region28: #{tpu_custom_call.1} parent=5 // pred_fallthru
      _
    %p195 = scmp.le.s32.totalorder 1, %s11
    %p196 = scmp.lt.s32.totalorder %s11, 3
    %p197 = pnand %p195, %p196
    %p198 = pneg %p197
    // Predicated region
    $region37: #{tpu_custom_call.1} parent=5 // pred_check
      _
    $region38: #{tpu_custom_call.1} parent=5 // pred_check_branch
      %200 = sbr.rel (%p197) target = $region40
    $region39: #{tpu_custom_call.1} parent=5 // pred_region
      %s201 = ssub.s32 %s11, 1
      %p202 = scmp.lt.s32.totalorder %s16, 1
      %s203 = scalar_select %p202, %s16, 1
      %s204 = smul.addr %s203, 4
      %s205 = smul.addr %s204, 8
      %s206 = scalar_lea.vmem %s0, %s205
      %p207 = pneg %p37
      %p208 = pneg %p34
      %p209 = scmp.lt.s32.totalorder %s16, 1
      %s210 = scalar_select %p209, %s16, 1
      %s211 = smul.addr %s210, 2
      %s212 = scalar_lea.vmem %s1, %s211
      %p213 = pneg %p63
      %p214 = pneg %p60
      %p215 = pneg %p84
      %p216 = pneg %p81
      %p217 = pneg %p105
      %p218 = pneg %p102
      %p219 = pneg %p126
      %p220 = pneg %p123
      %p221 = pneg %p152
      %p222 = pneg %p149
      %p223 = scmp.lt.s32.totalorder %s16, 1
      %s224 = scalar_select %p223, %s16, 1
      %s225 = smul.addr %s224, 4
      %s226 = smul.addr %s225, 8
      %s227 = scalar_lea.vmem %s5, %s226
      %p228 = scmp.lt.s32.totalorder %s16, 1
      %s229 = scalar_select %p228, %s16, 1
      %s230 = smul.addr %s229, 4
      %s231 = smul.addr %s230, 8
      %s232 = scalar_lea.vmem %s0, %s231
      %p233 = scmp.lt.s32.totalorder %s16, 1
      %s234 = scalar_select %p233, %s16, 1
      %s235 = smul.addr %s234, 2
      %s236 = scalar_lea.vmem %s1, %s235
      %p237 = scmp.lt.s32.totalorder %s16, 1
      %s238 = scalar_select %p237, %s16, 1
      %s239 = smul.addr %s238, 4
      %s240 = smul.addr %s239, 8
      %s241 = scalar_lea.vmem %s5, %s240
      %v242 = vld [vmem:[%s232] sm:$0xff]
      %v243 = vld [vmem:[%s232 + $0x8] sm:$0xff]
      %v244 = vld [vmem:[%s232 + $0x10] sm:$0xf]
      %v245 = vld [vmem:[%s232 + $0x18] sm:$0xf]
      %v246 = vld [vmem:[%s236] sm:$0x3]
      %v247 = vlaneseq
      %v248 = vand.u32 %v247, 127
      %v249 = vadd.s32 %v248, 128
      %vm250 = vcmp.lt.s32.totalorder %v248, 0
      %v251 = vsub.s32 0, %v248
      %v252 = vsel %vm250, %v251, %v248
      %v253 = vshrl.u32 %v252, 4
      %v254 = vand.u32 %v252, 15
      %v255 = vsub.s32 0, %v254
      %v256 = vsel %vm250, %v255, %v254
      %vm257 = vcmp.lt.s32.totalorder %v249, 0
      %v258 = vsub.s32 0, %v249
      %v259 = vsel %vm257, %v258, %v249
      %v260 = vshrl.u32 %v259, 4
      %v261 = vand.u32 %v259, 15
      %v262 = vsub.s32 0, %v261
      %v263 = vsel %vm257, %v262, %v261
      %vm264 = vcmp.ne.s32.totalorder %v256, 0
      %vm265 = vcmp.ne.s32.totalorder %v263, 0
      %vm266 = vcmp.lt.s32.totalorder %v256, 0
      %vm267 = vcmp.lt.s32.totalorder %v263, 0
      %vm268 = vmand %vm266, %vm264
      %vm269 = vmand %vm267, %vm265
      %v270 = vadd.s32 %v256, 16
      %v271 = vadd.s32 %v263, 16
      %v272 = vsel %vm268, %v270, %v256
      %v273 = vsel %vm269, %v271, %v263
      %vm274 = vcmp.eq.s32.totalorder %v272, 0
      %vm275 = vcmp.eq.s32.totalorder %v273, 0
      %vm276 = vcmp.eq.s32.totalorder %v272, 15
      %vm277 = vcmp.eq.s32.totalorder %v273, 15
      %280 = vrot.lane.b32.xlu0 %v243, 16
      %v281 = vpop.permute.xlu0 %280
      %282 = vrot.lane.b32.xlu0 %v245, 16
      %v283 = vpop.permute.xlu0 %282
      %288 = vrot.lane.b32.xlu0 %v242, 16
      %v289 = vpop.permute.xlu0 %288
      %290 = vrot.lane.b32.xlu0 %v244, 16
      %v291 = vpop.permute.xlu0 %290
      %vm292 = vcmask 130048
      %v293 = vsel %vm292, %v289, %v281
      %v294 = vsel %vm292, %v291, %v283
      %v299 = vsel %vm292, %v281, %v289
      %v300 = vsel %vm292, %v283, %v291
      %301 = vrot.lane.b32.xlu0 %v242, 112
      %v302 = vpop.permute.xlu0 %301
      %303 = vrot.lane.b32.xlu0 %v243, 112
      %v304 = vpop.permute.xlu0 %303
      %305 = vrot.lane.b32.xlu0 %v244, 112
      %v306 = vpop.permute.xlu0 %305
      %307 = vrot.lane.b32.xlu0 %v245, 112
      %v308 = vpop.permute.xlu0 %307
      %vm309 = vcmask 916480
      %v310 = vsel %vm309, %v302, %v304
      %v311 = vsel %vm309, %v306, %v308
      %v318 = vsel %vm309, %v304, %v302
      %v319 = vsel %vm309, %v308, %v306
      %v320 = vmul.f32 %v242, 2.0
      %v321 = vmul.f32 %v243, 2.0
      %v322 = vmul.f32 %v244, 2.0
      %v323 = vmul.f32 %v245, 2.0
      %v324 = vadd.f32 %v299, %v320
      %v325 = vadd.f32 %v293, %v321
      %v326 = vadd.f32 %v300, %v322
      %v327 = vadd.f32 %v294, %v323
      %v328 = vadd.f32 %v324, %v310
      %v329 = vadd.f32 %v325, %v318
      %v330 = vadd.f32 %v326, %v311
      %v331 = vadd.f32 %v327, %v319
      %v332 = vsub.f32 %v310, %v299
      %v333 = vsub.f32 %v318, %v293
      %v334 = vsub.f32 %v311, %v300
      %v335 = vsub.f32 %v319, %v294
      %340 = vrot.lane.b32.xlu0 %v328, 113
      %v341 = vpop.permute.xlu0 %340
      %342 = vrot.lane.b32.xlu0 %v329, 113
      %v343 = vpop.permute.xlu0 %342
      %344 = vrot.lane.b32.xlu0 %v330, 113
      %v345 = vpop.permute.xlu0 %344
      %346 = vrot.lane.b32.xlu0 %v331, 113
      %v347 = vpop.permute.xlu0 %346
      %vm348 = vcmask 924672
      %v349 = vsel %vm348, %v341, %v343
      %v350 = vsel %vm348, %v345, %v347
      %v357 = vsel %vm348, %v343, %v341
      %v358 = vsel %vm348, %v347, %v345
      %359 = vrot.lane.b32.xlu0 %v329, 1
      %v360 = vpop.permute.xlu0 %359
      %361 = vrot.lane.b32.xlu0 %v331, 1
      %v362 = vpop.permute.xlu0 %361
      %365 = vrot.lane.b32.xlu0 %v328, 1
      %v366 = vpop.permute.xlu0 %365
      %367 = vrot.lane.b32.xlu0 %v330, 1
      %v368 = vpop.permute.xlu0 %367
      %vm369 = vcmask 7168
      %v370 = vsel %vm369, %v366, %v360
      %v371 = vsel %vm369, %v368, %v362
      %v376 = vsel %vm369, %v360, %v366
      %v377 = vsel %vm369, %v362, %v368
      %v378 = vsel %vm274, %v349, %v376
      %v379 = vsel %vm275, %v357, %v370
      %v380 = vsel %vm274, %v350, %v377
      %v381 = vsel %vm275, %v358, %v371
      %382 = vrot.lane.b32.xlu0 %v329, 15
      %v383 = vpop.permute.xlu0 %382
      %384 = vrot.lane.b32.xlu0 %v331, 15
      %v385 = vpop.permute.xlu0 %384
      %388 = vrot.lane.b32.xlu0 %v328, 15
      %v389 = vpop.permute.xlu0 %388
      %390 = vrot.lane.b32.xlu0 %v330, 15
      %v391 = vpop.permute.xlu0 %390
      %vm392 = vcmask 121856
      %v393 = vsel %vm392, %v389, %v383
      %v394 = vsel %vm392, %v391, %v385
      %v399 = vsel %vm392, %v383, %v389
      %v400 = vsel %vm392, %v385, %v391
      %401 = vrot.lane.b32.xlu0 %v328, 127
      %v402 = vpop.permute.xlu0 %401
      %403 = vrot.lane.b32.xlu0 %v329, 127
      %v404 = vpop.permute.xlu0 %403
      %405 = vrot.lane.b32.xlu0 %v330, 127
      %v406 = vpop.permute.xlu0 %405
      %407 = vrot.lane.b32.xlu0 %v331, 127
      %v408 = vpop.permute.xlu0 %407
      %vm409 = vcmask 1039360
      %v410 = vsel %vm409, %v402, %v404
      %v411 = vsel %vm409, %v406, %v408
      %v418 = vsel %vm409, %v404, %v402
      %v419 = vsel %vm409, %v408, %v406
      %v420 = vsel %vm276, %v399, %v410
      %v421 = vsel %vm277, %v393, %v418
      %v422 = vsel %vm276, %v400, %v411
      %v423 = vsel %vm277, %v394, %v419
      %428 = vrot.lane.b32.xlu0 %v332, 113
      %v429 = vpop.permute.xlu0 %428
      %430 = vrot.lane.b32.xlu0 %v333, 113
      %v431 = vpop.permute.xlu0 %430
      %432 = vrot.lane.b32.xlu0 %v334, 113
      %v433 = vpop.permute.xlu0 %432
      %434 = vrot.lane.b32.xlu0 %v335, 113
      %v435 = vpop.permute.xlu0 %434
      %v436 = vsel %vm348, %v429, %v431
      %v437 = vsel %vm348, %v433, %v435
      %v444 = vsel %vm348, %v431, %v429
      %v445 = vsel %vm348, %v435, %v433
      %446 = vrot.lane.b32.xlu0 %v333, 1
      %v447 = vpop.permute.xlu0 %446
      %448 = vrot.lane.b32.xlu0 %v335, 1
      %v449 = vpop.permute.xlu0 %448
      %452 = vrot.lane.b32.xlu0 %v332, 1
      %v453 = vpop.permute.xlu0 %452
      %454 = vrot.lane.b32.xlu0 %v334, 1
      %v455 = vpop.permute.xlu0 %454
      %v456 = vsel %vm369, %v453, %v447
      %v457 = vsel %vm369, %v455, %v449
      %v462 = vsel %vm369, %v447, %v453
      %v463 = vsel %vm369, %v449, %v455
      %v464 = vsel %vm274, %v436, %v462
      %v465 = vsel %vm275, %v444, %v456
      %v466 = vsel %vm274, %v437, %v463
      %v467 = vsel %vm275, %v445, %v457
      %468 = vrot.lane.b32.xlu0 %v333, 15
      %v469 = vpop.permute.xlu0 %468
      %470 = vrot.lane.b32.xlu0 %v335, 15
      %v471 = vpop.permute.xlu0 %470
      %474 = vrot.lane.b32.xlu0 %v332, 15
      %v475 = vpop.permute.xlu0 %474
      %476 = vrot.lane.b32.xlu0 %v334, 15
      %v477 = vpop.permute.xlu0 %476
      %v478 = vsel %vm392, %v475, %v469
      %v479 = vsel %vm392, %v477, %v471
      %v484 = vsel %vm392, %v469, %v475
      %v485 = vsel %vm392, %v471, %v477
      %486 = vrot.lane.b32.xlu0 %v332, 127
      %v487 = vpop.permute.xlu0 %486
      %488 = vrot.lane.b32.xlu0 %v333, 127
      %v489 = vpop.permute.xlu0 %488
      %490 = vrot.lane.b32.xlu0 %v334, 127
      %v491 = vpop.permute.xlu0 %490
      %492 = vrot.lane.b32.xlu0 %v335, 127
      %v493 = vpop.permute.xlu0 %492
      %v494 = vsel %vm409, %v487, %v489
      %v495 = vsel %vm409, %v491, %v493
      %v502 = vsel %vm409, %v489, %v487
      %v503 = vsel %vm409, %v493, %v491
      %v504 = vsel %vm276, %v484, %v494
      %v505 = vsel %vm277, %v478, %v502
      %v506 = vsel %vm276, %v485, %v495
      %v507 = vsel %vm277, %v479, %v503
      %v508 = vsub.f32 %v420, %v378
      %v509 = vsub.f32 %v421, %v379
      %v510 = vsub.f32 %v422, %v380
      %v511 = vsub.f32 %v423, %v381
      %v512 = vmul.f32 %v332, 2.0
      %v513 = vmul.f32 %v333, 2.0
      %v514 = vmul.f32 %v334, 2.0
      %v515 = vmul.f32 %v335, 2.0
      %v516 = vadd.f32 %v464, %v512
      %v517 = vadd.f32 %v465, %v513
      %v518 = vadd.f32 %v466, %v514
      %v519 = vadd.f32 %v467, %v515
      %v520 = vadd.f32 %v516, %v504
      %v521 = vadd.f32 %v517, %v505
      %v522 = vadd.f32 %v518, %v506
      %v523 = vadd.f32 %v519, %v507
      %v524 = vadd.f32 %v378, %v420
      %v525 = vadd.f32 %v379, %v421
      %v526 = vadd.f32 %v380, %v422
      %v527 = vadd.f32 %v381, %v423
      %v528 = vmul.f32 %v328, 2.0
      %v529 = vmul.f32 %v329, 2.0
      %v530 = vmul.f32 %v330, 2.0
      %v531 = vmul.f32 %v331, 2.0
      %v532 = vadd.f32 %v524, %v528
      %v533 = vadd.f32 %v525, %v529
      %v534 = vadd.f32 %v526, %v530
      %v535 = vadd.f32 %v527, %v531
      %v536 = vmul.f32 %v242, 16.0
      %v537 = vmul.f32 %v243, 16.0
      %v538 = vmul.f32 %v244, 16.0
      %v539 = vmul.f32 %v245, 16.0
      %v540 = vsub.f32 %v532, %v536
      %v541 = vsub.f32 %v533, %v537
      %v542 = vsub.f32 %v534, %v538
      %v543 = vsub.f32 %v535, %v539
      %v544 = vld [vmem:[%s2] sm:$0xff]
      %v545 = vld [vmem:[%s2 + $0x8] sm:$0xff]
      %v546 = vld [vmem:[%s2 + $0x10] sm:$0xff]
      %v547 = vld [vmem:[%s2 + $0x18] sm:$0xff]
      %v548 = vld [vmem:[%s2 + $0x20] sm:$0xff]
      %v549 = vld [vmem:[%s2 + $0x28] sm:$0xff]
      %v550 = vld [vmem:[%s2 + $0x30] sm:$0xff]
      %v551 = vld [vmem:[%s2 + $0x38] sm:$0xff]
      %v552 = vld [vmem:[%s2 + $0x40] sm:$0xff]
      %v553 = vld [vmem:[%s2 + $0x48] sm:$0xff]
      %v554 = vld [vmem:[%s2 + $0x50] sm:$0xff]
      %v555 = vld [vmem:[%s2 + $0x58] sm:$0xff]
      %s556 = scalar_lea.vmem %s2, 96
      %v557 = vld [vmem:[%s556] sm:$0xff]
      %v558 = vld [vmem:[%s556 + $0x8] sm:$0xff]
      %v559 = vld [vmem:[%s556 + $0x10] sm:$0xff]
      %v560 = vld [vmem:[%s556 + $0x18] sm:$0xff]
      %v561 = vld [vmem:[%s556 + $0x20] sm:$0xff]
      %v562 = vld [vmem:[%s556 + $0x28] sm:$0xff]
      %v563 = vld [vmem:[%s556 + $0x30] sm:$0xff]
      %v564 = vld [vmem:[%s556 + $0x38] sm:$0xff]
      %v565 = vld [vmem:[%s556 + $0x40] sm:$0xff]
      %v566 = vld [vmem:[%s556 + $0x48] sm:$0xff]
      %v567 = vld [vmem:[%s556 + $0x50] sm:$0xff]
      %v568 = vld [vmem:[%s556 + $0x58] sm:$0xff]
      %vm569 = vcmask 97280
      %v571 = vsel %vm569, %v557, 0
      %v574 = vsel %vm569, %v558, 0
      %v577 = vsel %vm569, %v559, 0
      %v580 = vsel %vm569, %v560, 0
      %v583 = vsel %vm569, %v561, 0
      %v586 = vsel %vm569, %v562, 0
      %v589 = vsel %vm569, %v563, 0
      %v592 = vsel %vm569, %v564, 0
      %v595 = vsel %vm569, %v565, 0
      %v598 = vsel %vm569, %v566, 0
      %v601 = vsel %vm569, %v567, 0
      %v604 = vsel %vm569, %v568, 0
      %vm606 = vcmask 1043456
      %v608 = vsel %vm606, %v510, 0
      %v611 = vsel %vm606, %v511, 0
      %613 = vmatpush.msra.mxu0 0.0
      %614 = vmatpush.msra.mxu0 0.0
      %615 = vmatpush.msra.mxu0 0.0
      %616 = vmatpush.msra.mxu0 0.0
      %617 = vmatpush.msra.mxu0 0.0
      %618 = vmatpush.msra.mxu0 0.0
      %619 = vmatpush.msra.mxu0 0.0
      %620 = vmatpush.msra.mxu0 0.0
      %621 = vmatpush.msra.mxu0 0.0
      %622 = vmatpush.msra.mxu0 0.0
      %623 = vmatpush.msra.mxu0 0.0
      %624 = vmatpush.msra.mxu0 0.0
      %625 = vmatpush.msra.mxu0 0.0
      %626 = vmatpush.msra.mxu0 0.0
      %627 = vmatpush.msra.mxu0 %v608
      %628 = vmatpush.msra.mxu0 %v508
      %629 = vmatmul.f32.gmra.mxu0 %v571
      %v630 = vpop.f32.mrf.mxu0
      %v631 = vadd.f32 0.0, %v630
      %632 = vmatmul.f32.gmra.mxu0 %v574
      %v633 = vpop.f32.mrf.mxu0
      %v634 = vadd.f32 0.0, %v633
      %635 = vmatmul.f32.gmra.mxu0 %v577
      %v636 = vpop.f32.mrf.mxu0
      %v637 = vadd.f32 0.0, %v636
      %638 = vmatmul.f32.gmra.mxu0 %v580
      %v639 = vpop.f32.mrf.mxu0
      %v640 = vadd.f32 0.0, %v639
      %641 = vmatmul.f32.gmra.mxu0 %v583
      %v642 = vpop.f32.mrf.mxu0
      %v643 = vadd.f32 0.0, %v642
      %644 = vmatmul.f32.gmra.mxu0 %v586
      %v645 = vpop.f32.mrf.mxu0
      %v646 = vadd.f32 0.0, %v645
      %647 = vmatmul.f32.gmra.mxu0 %v589
      %v648 = vpop.f32.mrf.mxu0
      %v649 = vadd.f32 0.0, %v648
      %650 = vmatmul.f32.gmra.mxu0 %v592
      %v651 = vpop.f32.mrf.mxu0
      %v652 = vadd.f32 0.0, %v651
      %653 = vmatmul.f32.gmra.mxu0 %v595
      %v654 = vpop.f32.mrf.mxu0
      %v655 = vadd.f32 0.0, %v654
      %656 = vmatmul.f32.gmra.mxu0 %v598
      %v657 = vpop.f32.mrf.mxu0
      %v658 = vadd.f32 0.0, %v657
      %659 = vmatmul.f32.gmra.mxu0 %v601
      %v660 = vpop.f32.mrf.mxu0
      %v661 = vadd.f32 0.0, %v660
      %662 = vmatmul.f32.gmra.mxu0 %v604
      %v663 = vpop.f32.mrf.mxu0
      %v664 = vadd.f32 0.0, %v663
      %665 = vdwg.mxu0
      %666 = vmatpush.msra.mxu0 0.0
      %667 = vmatpush.msra.mxu0 0.0
      %668 = vmatpush.msra.mxu0 0.0
      %669 = vmatpush.msra.mxu0 0.0
      %670 = vmatpush.msra.mxu0 0.0
      %671 = vmatpush.msra.mxu0 0.0
      %672 = vmatpush.msra.mxu0 0.0
      %673 = vmatpush.msra.mxu0 0.0
      %674 = vmatpush.msra.mxu0 0.0
      %675 = vmatpush.msra.mxu0 0.0
      %676 = vmatpush.msra.mxu0 0.0
      %677 = vmatpush.msra.mxu0 0.0
      %678 = vmatpush.msra.mxu0 0.0
      %679 = vmatpush.msra.mxu0 0.0
      %680 = vmatpush.msra.mxu0 %v611
      %681 = vmatpush.msra.mxu0 %v509
      %682 = vmatmul.f32.gmra.mxu0 %v571
      %v683 = vpop.f32.mrf.mxu0
      %v684 = vadd.f32 0.0, %v683
      %685 = vmatmul.f32.gmra.mxu0 %v574
      %v686 = vpop.f32.mrf.mxu0
      %v687 = vadd.f32 0.0, %v686
      %688 = vmatmul.f32.gmra.mxu0 %v577
      %v689 = vpop.f32.mrf.mxu0
      %v690 = vadd.f32 0.0, %v689
      %691 = vmatmul.f32.gmra.mxu0 %v580
      %v692 = vpop.f32.mrf.mxu0
      %v693 = vadd.f32 0.0, %v692
      %694 = vmatmul.f32.gmra.mxu0 %v583
      %v695 = vpop.f32.mrf.mxu0
      %v696 = vadd.f32 0.0, %v695
      %697 = vmatmul.f32.gmra.mxu0 %v586
      %v698 = vpop.f32.mrf.mxu0
      %v699 = vadd.f32 0.0, %v698
      %700 = vmatmul.f32.gmra.mxu0 %v589
      %v701 = vpop.f32.mrf.mxu0
      %v702 = vadd.f32 0.0, %v701
      %703 = vmatmul.f32.gmra.mxu0 %v592
      %v704 = vpop.f32.mrf.mxu0
      %v705 = vadd.f32 0.0, %v704
      %706 = vmatmul.f32.gmra.mxu0 %v595
      %v707 = vpop.f32.mrf.mxu0
      %v708 = vadd.f32 0.0, %v707
      %709 = vmatmul.f32.gmra.mxu0 %v598
      %v710 = vpop.f32.mrf.mxu0
      %v711 = vadd.f32 0.0, %v710
      %712 = vmatmul.f32.gmra.mxu0 %v601
      %v713 = vpop.f32.mrf.mxu0
      %v714 = vadd.f32 0.0, %v713
      %715 = vmatmul.f32.gmra.mxu0 %v604
      %v716 = vpop.f32.mrf.mxu0
      %v717 = vadd.f32 0.0, %v716
      %718 = vdwg.mxu0
      %v720 = vsel %vm569, %v544, 0
      %v723 = vsel %vm569, %v545, 0
      %v726 = vsel %vm569, %v546, 0
      %v729 = vsel %vm569, %v547, 0
      %v732 = vsel %vm569, %v548, 0
      %v735 = vsel %vm569, %v549, 0
      %v738 = vsel %vm569, %v550, 0
      %v741 = vsel %vm569, %v551, 0
      %v744 = vsel %vm569, %v552, 0
      %v747 = vsel %vm569, %v553, 0
      %v750 = vsel %vm569, %v554, 0
      %v753 = vsel %vm569, %v555, 0
      %v755 = vsel %vm606, %v244, 0
      %v757 = vsel %vm606, %v245, 0
      %759 = vmatpush.msra.mxu0 0.0
      %760 = vmatpush.msra.mxu0 0.0
      %761 = vmatpush.msra.mxu0 0.0
      %762 = vmatpush.msra.mxu0 0.0
      %763 = vmatpush.msra.mxu0 0.0
      %764 = vmatpush.msra.mxu0 0.0
      %765 = vmatpush.msra.mxu0 0.0
      %766 = vmatpush.msra.mxu0 0.0
      %767 = vmatpush.msra.mxu0 0.0
      %768 = vmatpush.msra.mxu0 0.0
      %769 = vmatpush.msra.mxu0 0.0
      %770 = vmatpush.msra.mxu0 0.0
      %771 = vmatpush.msra.mxu0 0.0
      %772 = vmatpush.msra.mxu0 0.0
      %773 = vmatpush.msra.mxu0 %v755
      %774 = vmatpush.msra.mxu0 %v242
      %775 = vmatmul.f32.gmra.mxu0 %v720
      %v776 = vpop.f32.mrf.mxu0
      %v777 = vadd.f32 %v631, %v776
      %778 = vmatmul.f32.gmra.mxu0 %v723
      %v779 = vpop.f32.mrf.mxu0
      %v780 = vadd.f32 %v634, %v779
      %781 = vmatmul.f32.gmra.mxu0 %v726
      %v782 = vpop.f32.mrf.mxu0
      %v783 = vadd.f32 %v637, %v782
      %784 = vmatmul.f32.gmra.mxu0 %v729
      %v785 = vpop.f32.mrf.mxu0
      %v786 = vadd.f32 %v640, %v785
      %787 = vmatmul.f32.gmra.mxu0 %v732
      %v788 = vpop.f32.mrf.mxu0
      %v789 = vadd.f32 %v643, %v788
      %790 = vmatmul.f32.gmra.mxu0 %v735
      %v791 = vpop.f32.mrf.mxu0
      %v792 = vadd.f32 %v646, %v791
      %793 = vmatmul.f32.gmra.mxu0 %v738
      %v794 = vpop.f32.mrf.mxu0
      %v795 = vadd.f32 %v649, %v794
      %796 = vmatmul.f32.gmra.mxu0 %v741
      %v797 = vpop.f32.mrf.mxu0
      %v798 = vadd.f32 %v652, %v797
      %799 = vmatmul.f32.gmra.mxu0 %v744
      %v800 = vpop.f32.mrf.mxu0
      %v801 = vadd.f32 %v655, %v800
      %802 = vmatmul.f32.gmra.mxu0 %v747
      %v803 = vpop.f32.mrf.mxu0
      %v804 = vadd.f32 %v658, %v803
      %805 = vmatmul.f32.gmra.mxu0 %v750
      %v806 = vpop.f32.mrf.mxu0
      %v807 = vadd.f32 %v661, %v806
      %808 = vmatmul.f32.gmra.mxu0 %v753
      %v809 = vpop.f32.mrf.mxu0
      %v810 = vadd.f32 %v664, %v809
      %811 = vdwg.mxu0
      %812 = vmatpush.msra.mxu0 0.0
      %813 = vmatpush.msra.mxu0 0.0
      %814 = vmatpush.msra.mxu0 0.0
      %815 = vmatpush.msra.mxu0 0.0
      %816 = vmatpush.msra.mxu0 0.0
      %817 = vmatpush.msra.mxu0 0.0
      %818 = vmatpush.msra.mxu0 0.0
      %819 = vmatpush.msra.mxu0 0.0
      %820 = vmatpush.msra.mxu0 0.0
      %821 = vmatpush.msra.mxu0 0.0
      %822 = vmatpush.msra.mxu0 0.0
      %823 = vmatpush.msra.mxu0 0.0
      %824 = vmatpush.msra.mxu0 0.0
      %825 = vmatpush.msra.mxu0 0.0
      %826 = vmatpush.msra.mxu0 %v757
      %827 = vmatpush.msra.mxu0 %v243
      %828 = vmatmul.f32.gmra.mxu0 %v720
      %v829 = vpop.f32.mrf.mxu0
      %v830 = vadd.f32 %v684, %v829
      %831 = vmatmul.f32.gmra.mxu0 %v723
      %v832 = vpop.f32.mrf.mxu0
      %v833 = vadd.f32 %v687, %v832
      %834 = vmatmul.f32.gmra.mxu0 %v726
      %v835 = vpop.f32.mrf.mxu0
      %v836 = vadd.f32 %v690, %v835
      %837 = vmatmul.f32.gmra.mxu0 %v729
      %v838 = vpop.f32.mrf.mxu0
      %v839 = vadd.f32 %v693, %v838
      %840 = vmatmul.f32.gmra.mxu0 %v732
      %v841 = vpop.f32.mrf.mxu0
      %v842 = vadd.f32 %v696, %v841
      %843 = vmatmul.f32.gmra.mxu0 %v735
      %v844 = vpop.f32.mrf.mxu0
      %v845 = vadd.f32 %v699, %v844
      %846 = vmatmul.f32.gmra.mxu0 %v738
      %v847 = vpop.f32.mrf.mxu0
      %v848 = vadd.f32 %v702, %v847
      %849 = vmatmul.f32.gmra.mxu0 %v741
      %v850 = vpop.f32.mrf.mxu0
      %v851 = vadd.f32 %v705, %v850
      %852 = vmatmul.f32.gmra.mxu0 %v744
      %v853 = vpop.f32.mrf.mxu0
      %v854 = vadd.f32 %v708, %v853
      %855 = vmatmul.f32.gmra.mxu0 %v747
      %v856 = vpop.f32.mrf.mxu0
      %v857 = vadd.f32 %v711, %v856
      %858 = vmatmul.f32.gmra.mxu0 %v750
      %v859 = vpop.f32.mrf.mxu0
      %v860 = vadd.f32 %v714, %v859
      %861 = vmatmul.f32.gmra.mxu0 %v753
      %v862 = vpop.f32.mrf.mxu0
      %v863 = vadd.f32 %v717, %v862
      %864 = vdwg.mxu0
      %s865 = scalar_lea.vmem %s2, 192
      %v866 = vld [vmem:[%s865] sm:$0xff]
      %v867 = vld [vmem:[%s865 + $0x8] sm:$0xff]
      %v868 = vld [vmem:[%s865 + $0x10] sm:$0xff]
      %v869 = vld [vmem:[%s865 + $0x18] sm:$0xff]
      %v870 = vld [vmem:[%s865 + $0x20] sm:$0xff]
      %v871 = vld [vmem:[%s865 + $0x28] sm:$0xff]
      %v872 = vld [vmem:[%s865 + $0x30] sm:$0xff]
      %v873 = vld [vmem:[%s865 + $0x38] sm:$0xff]
      %v874 = vld [vmem:[%s865 + $0x40] sm:$0xff]
      %v875 = vld [vmem:[%s865 + $0x48] sm:$0xff]
      %v876 = vld [vmem:[%s865 + $0x50] sm:$0xff]
      %v877 = vld [vmem:[%s865 + $0x58] sm:$0xff]
      %v879 = vsel %vm569, %v866, 0
      %v882 = vsel %vm569, %v867, 0
      %v885 = vsel %vm569, %v868, 0
      %v888 = vsel %vm569, %v869, 0
      %v891 = vsel %vm569, %v870, 0
      %v894 = vsel %vm569, %v871, 0
      %v897 = vsel %vm569, %v872, 0
      %v900 = vsel %vm569, %v873, 0
      %v903 = vsel %vm569, %v874, 0
      %v906 = vsel %vm569, %v875, 0
      %v909 = vsel %vm569, %v876, 0
      %v912 = vsel %vm569, %v877, 0
      %v915 = vsel %vm606, %v522, 0
      %v918 = vsel %vm606, %v523, 0
      %920 = vmatpush.msra.mxu0 0.0
      %921 = vmatpush.msra.mxu0 0.0
      %922 = vmatpush.msra.mxu0 0.0
      %923 = vmatpush.msra.mxu0 0.0
      %924 = vmatpush.msra.mxu0 0.0
      %925 = vmatpush.msra.mxu0 0.0
      %926 = vmatpush.msra.mxu0 0.0
      %927 = vmatpush.msra.mxu0 0.0
      %928 = vmatpush.msra.mxu0 0.0
      %929 = vmatpush.msra.mxu0 0.0
      %930 = vmatpush.msra.mxu0 0.0
      %931 = vmatpush.msra.mxu0 0.0
      %932 = vmatpush.msra.mxu0 0.0
      %933 = vmatpush.msra.mxu0 0.0
      %934 = vmatpush.msra.mxu0 %v915
      %935 = vmatpush.msra.mxu0 %v520
      %936 = vmatmul.f32.gmra.mxu0 %v879
      %v937 = vpop.f32.mrf.mxu0
      %v938 = vadd.f32 0.0, %v937
      %939 = vmatmul.f32.gmra.mxu0 %v882
      %v940 = vpop.f32.mrf.mxu0
      %v941 = vadd.f32 0.0, %v940
      %942 = vmatmul.f32.gmra.mxu0 %v885
      %v943 = vpop.f32.mrf.mxu0
      %v944 = vadd.f32 0.0, %v943
      %945 = vmatmul.f32.gmra.mxu0 %v888
      %v946 = vpop.f32.mrf.mxu0
      %v947 = vadd.f32 0.0, %v946
      %948 = vmatmul.f32.gmra.mxu0 %v891
      %v949 = vpop.f32.mrf.mxu0
      %v950 = vadd.f32 0.0, %v949
      %951 = vmatmul.f32.gmra.mxu0 %v894
      %v952 = vpop.f32.mrf.mxu0
      %v953 = vadd.f32 0.0, %v952
      %954 = vmatmul.f32.gmra.mxu0 %v897
      %v955 = vpop.f32.mrf.mxu0
      %v956 = vadd.f32 0.0, %v955
      %957 = vmatmul.f32.gmra.mxu0 %v900
      %v958 = vpop.f32.mrf.mxu0
      %v959 = vadd.f32 0.0, %v958
      %960 = vmatmul.f32.gmra.mxu0 %v903
      %v961 = vpop.f32.mrf.mxu0
      %v962 = vadd.f32 0.0, %v961
      %963 = vmatmul.f32.gmra.mxu0 %v906
      %v964 = vpop.f32.mrf.mxu0
      %v965 = vadd.f32 0.0, %v964
      %966 = vmatmul.f32.gmra.mxu0 %v909
      %v967 = vpop.f32.mrf.mxu0
      %v968 = vadd.f32 0.0, %v967
      %969 = vmatmul.f32.gmra.mxu0 %v912
      %v970 = vpop.f32.mrf.mxu0
      %v971 = vadd.f32 0.0, %v970
      %972 = vdwg.mxu0
      %973 = vmatpush.msra.mxu0 0.0
      %974 = vmatpush.msra.mxu0 0.0
      %975 = vmatpush.msra.mxu0 0.0
      %976 = vmatpush.msra.mxu0 0.0
      %977 = vmatpush.msra.mxu0 0.0
      %978 = vmatpush.msra.mxu0 0.0
      %979 = vmatpush.msra.mxu0 0.0
      %980 = vmatpush.msra.mxu0 0.0
      %981 = vmatpush.msra.mxu0 0.0
      %982 = vmatpush.msra.mxu0 0.0
      %983 = vmatpush.msra.mxu0 0.0
      %984 = vmatpush.msra.mxu0 0.0
      %985 = vmatpush.msra.mxu0 0.0
      %986 = vmatpush.msra.mxu0 0.0
      %987 = vmatpush.msra.mxu0 %v918
      %988 = vmatpush.msra.mxu0 %v521
      %989 = vmatmul.f32.gmra.mxu0 %v879
      %v990 = vpop.f32.mrf.mxu0
      %v991 = vadd.f32 0.0, %v990
      %992 = vmatmul.f32.gmra.mxu0 %v882
      %v993 = vpop.f32.mrf.mxu0
      %v994 = vadd.f32 0.0, %v993
      %995 = vmatmul.f32.gmra.mxu0 %v885
      %v996 = vpop.f32.mrf.mxu0
      %v997 = vadd.f32 0.0, %v996
      %998 = vmatmul.f32.gmra.mxu0 %v888
      %v999 = vpop.f32.mrf.mxu0
      %v1000 = vadd.f32 0.0, %v999
      %1001 = vmatmul.f32.gmra.mxu0 %v891
      %v1002 = vpop.f32.mrf.mxu0
      %v1003 = vadd.f32 0.0, %v1002
      %1004 = vmatmul.f32.gmra.mxu0 %v894
      %v1005 = vpop.f32.mrf.mxu0
      %v1006 = vadd.f32 0.0, %v1005
      %1007 = vmatmul.f32.gmra.mxu0 %v897
      %v1008 = vpop.f32.mrf.mxu0
      %v1009 = vadd.f32 0.0, %v1008
      %1010 = vmatmul.f32.gmra.mxu0 %v900
      %v1011 = vpop.f32.mrf.mxu0
      %v1012 = vadd.f32 0.0, %v1011
      %1013 = vmatmul.f32.gmra.mxu0 %v903
      %v1014 = vpop.f32.mrf.mxu0
      %v1015 = vadd.f32 0.0, %v1014
      %1016 = vmatmul.f32.gmra.mxu0 %v906
      %v1017 = vpop.f32.mrf.mxu0
      %v1018 = vadd.f32 0.0, %v1017
      %1019 = vmatmul.f32.gmra.mxu0 %v909
      %v1020 = vpop.f32.mrf.mxu0
      %v1021 = vadd.f32 0.0, %v1020
      %1022 = vmatmul.f32.gmra.mxu0 %v912
      %v1023 = vpop.f32.mrf.mxu0
      %v1024 = vadd.f32 0.0, %v1023
      %1025 = vdwg.mxu0
      %v1026 = vadd.f32 %v777, %v938
      %v1027 = vadd.f32 %v830, %v991
      %v1028 = vadd.f32 %v780, %v941
      %v1029 = vadd.f32 %v833, %v994
      %v1030 = vadd.f32 %v783, %v944
      %v1031 = vadd.f32 %v836, %v997
      %v1032 = vadd.f32 %v786, %v947
      %v1033 = vadd.f32 %v839, %v1000
      %v1034 = vadd.f32 %v789, %v950
      %v1035 = vadd.f32 %v842, %v1003
      %v1036 = vadd.f32 %v792, %v953
      %v1037 = vadd.f32 %v845, %v1006
      %v1038 = vadd.f32 %v795, %v956
      %v1039 = vadd.f32 %v848, %v1009
      %v1040 = vadd.f32 %v798, %v959
      %v1041 = vadd.f32 %v851, %v1012
      %v1042 = vadd.f32 %v801, %v962
      %v1043 = vadd.f32 %v854, %v1015
      %v1044 = vadd.f32 %v804, %v965
      %v1045 = vadd.f32 %v857, %v1018
      %v1046 = vadd.f32 %v807, %v968
      %v1047 = vadd.f32 %v860, %v1021
      %v1048 = vadd.f32 %v810, %v971
      %v1049 = vadd.f32 %v863, %v1024
      %s1050 = scalar_lea.vmem %s2, 288
      %v1051 = vld [vmem:[%s1050] sm:$0xff]
      %v1052 = vld [vmem:[%s1050 + $0x8] sm:$0xff]
      %v1053 = vld [vmem:[%s1050 + $0x10] sm:$0xff]
      %v1054 = vld [vmem:[%s1050 + $0x18] sm:$0xff]
      %v1055 = vld [vmem:[%s1050 + $0x20] sm:$0xff]
      %v1056 = vld [vmem:[%s1050 + $0x28] sm:$0xff]
      %v1057 = vld [vmem:[%s1050 + $0x30] sm:$0xff]
      %v1058 = vld [vmem:[%s1050 + $0x38] sm:$0xff]
      %v1059 = vld [vmem:[%s1050 + $0x40] sm:$0xff]
      %v1060 = vld [vmem:[%s1050 + $0x48] sm:$0xff]
      %v1061 = vld [vmem:[%s1050 + $0x50] sm:$0xff]
      %v1062 = vld [vmem:[%s1050 + $0x58] sm:$0xff]
      %v1064 = vsel %vm569, %v1051, 0
      %v1067 = vsel %vm569, %v1052, 0
      %v1070 = vsel %vm569, %v1053, 0
      %v1073 = vsel %vm569, %v1054, 0
      %v1076 = vsel %vm569, %v1055, 0
      %v1079 = vsel %vm569, %v1056, 0
      %v1082 = vsel %vm569, %v1057, 0
      %v1085 = vsel %vm569, %v1058, 0
      %v1088 = vsel %vm569, %v1059, 0
      %v1091 = vsel %vm569, %v1060, 0
      %v1094 = vsel %vm569, %v1061, 0
      %v1097 = vsel %vm569, %v1062, 0
      %v1100 = vsel %vm606, %v542, 0
      %v1103 = vsel %vm606, %v543, 0
      %1105 = vmatpush.msra.mxu0 0.0
      %1106 = vmatpush.msra.mxu0 0.0
      %1107 = vmatpush.msra.mxu0 0.0
      %1108 = vmatpush.msra.mxu0 0.0
      %1109 = vmatpush.msra.mxu0 0.0
      %1110 = vmatpush.msra.mxu0 0.0
      %1111 = vmatpush.msra.mxu0 0.0
      %1112 = vmatpush.msra.mxu0 0.0
      %1113 = vmatpush.msra.mxu0 0.0
      %1114 = vmatpush.msra.mxu0 0.0
      %1115 = vmatpush.msra.mxu0 0.0
      %1116 = vmatpush.msra.mxu0 0.0
      %1117 = vmatpush.msra.mxu0 0.0
      %1118 = vmatpush.msra.mxu0 0.0
      %1119 = vmatpush.msra.mxu0 %v1100
      %1120 = vmatpush.msra.mxu0 %v540
      %1121 = vmatmul.f32.gmra.mxu0 %v1064
      %v1122 = vpop.f32.mrf.mxu0
      %v1123 = vadd.f32 0.0, %v1122
      %1124 = vmatmul.f32.gmra.mxu0 %v1067
      %v1125 = vpop.f32.mrf.mxu0
      %v1126 = vadd.f32 0.0, %v1125
      %1127 = vmatmul.f32.gmra.mxu0 %v1070
      %v1128 = vpop.f32.mrf.mxu0
      %v1129 = vadd.f32 0.0, %v1128
      %1130 = vmatmul.f32.gmra.mxu0 %v1073
      %v1131 = vpop.f32.mrf.mxu0
      %v1132 = vadd.f32 0.0, %v1131
      %1133 = vmatmul.f32.gmra.mxu0 %v1076
      %v1134 = vpop.f32.mrf.mxu0
      %v1135 = vadd.f32 0.0, %v1134
      %1136 = vmatmul.f32.gmra.mxu0 %v1079
      %v1137 = vpop.f32.mrf.mxu0
      %v1138 = vadd.f32 0.0, %v1137
      %1139 = vmatmul.f32.gmra.mxu0 %v1082
      %v1140 = vpop.f32.mrf.mxu0
      %v1141 = vadd.f32 0.0, %v1140
      %1142 = vmatmul.f32.gmra.mxu0 %v1085
      %v1143 = vpop.f32.mrf.mxu0
      %v1144 = vadd.f32 0.0, %v1143
      %1145 = vmatmul.f32.gmra.mxu0 %v1088
      %v1146 = vpop.f32.mrf.mxu0
      %v1147 = vadd.f32 0.0, %v1146
      %1148 = vmatmul.f32.gmra.mxu0 %v1091
      %v1149 = vpop.f32.mrf.mxu0
      %v1150 = vadd.f32 0.0, %v1149
      %1151 = vmatmul.f32.gmra.mxu0 %v1094
      %v1152 = vpop.f32.mrf.mxu0
      %v1153 = vadd.f32 0.0, %v1152
      %1154 = vmatmul.f32.gmra.mxu0 %v1097
      %v1155 = vpop.f32.mrf.mxu0
      %v1156 = vadd.f32 0.0, %v1155
      %1157 = vdwg.mxu0
      %1158 = vmatpush.msra.mxu0 0.0
      %1159 = vmatpush.msra.mxu0 0.0
      %1160 = vmatpush.msra.mxu0 0.0
      %1161 = vmatpush.msra.mxu0 0.0
      %1162 = vmatpush.msra.mxu0 0.0
      %1163 = vmatpush.msra.mxu0 0.0
      %1164 = vmatpush.msra.mxu0 0.0
      %1165 = vmatpush.msra.mxu0 0.0
      %1166 = vmatpush.msra.mxu0 0.0
      %1167 = vmatpush.msra.mxu0 0.0
      %1168 = vmatpush.msra.mxu0 0.0
      %1169 = vmatpush.msra.mxu0 0.0
      %1170 = vmatpush.msra.mxu0 0.0
      %1171 = vmatpush.msra.mxu0 0.0
      %1172 = vmatpush.msra.mxu0 %v1103
      %1173 = vmatpush.msra.mxu0 %v541
      %1174 = vmatmul.f32.gmra.mxu0 %v1064
      %v1175 = vpop.f32.mrf.mxu0
      %v1176 = vadd.f32 0.0, %v1175
      %1177 = vmatmul.f32.gmra.mxu0 %v1067
      %v1178 = vpop.f32.mrf.mxu0
      %v1179 = vadd.f32 0.0, %v1178
      %1180 = vmatmul.f32.gmra.mxu0 %v1070
      %v1181 = vpop.f32.mrf.mxu0
      %v1182 = vadd.f32 0.0, %v1181
      %1183 = vmatmul.f32.gmra.mxu0 %v1073
      %v1184 = vpop.f32.mrf.mxu0
      %v1185 = vadd.f32 0.0, %v1184
      %1186 = vmatmul.f32.gmra.mxu0 %v1076
      %v1187 = vpop.f32.mrf.mxu0
      %v1188 = vadd.f32 0.0, %v1187
      %1189 = vmatmul.f32.gmra.mxu0 %v1079
      %v1190 = vpop.f32.mrf.mxu0
      %v1191 = vadd.f32 0.0, %v1190
      %1192 = vmatmul.f32.gmra.mxu0 %v1082
      %v1193 = vpop.f32.mrf.mxu0
      %v1194 = vadd.f32 0.0, %v1193
      %1195 = vmatmul.f32.gmra.mxu0 %v1085
      %v1196 = vpop.f32.mrf.mxu0
      %v1197 = vadd.f32 0.0, %v1196
      %1198 = vmatmul.f32.gmra.mxu0 %v1088
      %v1199 = vpop.f32.mrf.mxu0
      %v1200 = vadd.f32 0.0, %v1199
      %1201 = vmatmul.f32.gmra.mxu0 %v1091
      %v1202 = vpop.f32.mrf.mxu0
      %v1203 = vadd.f32 0.0, %v1202
      %1204 = vmatmul.f32.gmra.mxu0 %v1094
      %v1205 = vpop.f32.mrf.mxu0
      %v1206 = vadd.f32 0.0, %v1205
      %1207 = vmatmul.f32.gmra.mxu0 %v1097
      %v1208 = vpop.f32.mrf.mxu0
      %v1209 = vadd.f32 0.0, %v1208
      %1210 = vdwg.mxu0
      %v1211 = vadd.f32 %v1026, %v1123
      %v1212 = vadd.f32 %v1027, %v1176
      %v1213 = vadd.f32 %v1028, %v1126
      %v1214 = vadd.f32 %v1029, %v1179
      %v1215 = vadd.f32 %v1030, %v1129
      %v1216 = vadd.f32 %v1031, %v1182
      %v1217 = vadd.f32 %v1032, %v1132
      %v1218 = vadd.f32 %v1033, %v1185
      %v1219 = vadd.f32 %v1034, %v1135
      %v1220 = vadd.f32 %v1035, %v1188
      %v1221 = vadd.f32 %v1036, %v1138
      %v1222 = vadd.f32 %v1037, %v1191
      %v1223 = vadd.f32 %v1038, %v1141
      %v1224 = vadd.f32 %v1039, %v1194
      %v1225 = vadd.f32 %v1040, %v1144
      %v1226 = vadd.f32 %v1041, %v1197
      %v1227 = vadd.f32 %v1042, %v1147
      %v1228 = vadd.f32 %v1043, %v1200
      %v1229 = vadd.f32 %v1044, %v1150
      %v1230 = vadd.f32 %v1045, %v1203
      %v1231 = vadd.f32 %v1046, %v1153
      %v1232 = vadd.f32 %v1047, %v1206
      %v1233 = vadd.f32 %v1048, %v1156
      %v1234 = vadd.f32 %v1049, %v1209
      %v1235 = vld [vmem:[%s3] sm:$0xff]
      %v1236 = vld [vmem:[%s3 + $0x8] sm:$0xff]
      %v1237 = vld [vmem:[%s3 + $0x10] sm:$0xff]
      %v1238 = vld [vmem:[%s3 + $0x18] sm:$0xff]
      %v1239 = vld [vmem:[%s3 + $0x20] sm:$0xff]
      %v1240 = vld [vmem:[%s3 + $0x28] sm:$0xff]
      %v1241 = vld [vmem:[%s3 + $0x30] sm:$0xff]
      %v1242 = vld [vmem:[%s3 + $0x38] sm:$0xff]
      %v1243 = vld [vmem:[%s3 + $0x40] sm:$0xff]
      %v1244 = vld [vmem:[%s3 + $0x48] sm:$0xff]
      %v1245 = vld [vmem:[%s3 + $0x50] sm:$0xff]
      %v1246 = vld [vmem:[%s3 + $0x58] sm:$0xff]
      %1248 = vset.pattern.permute.xlu0 0
      %1249 = vperm.xlu0 %1248, %v1235
      %v1250 = vpop.permute.xlu0 %1249
      %1253 = vset.pattern.permute.xlu0 0
      %1254 = vperm.xlu0 %1253, %v1236
      %v1255 = vpop.permute.xlu0 %1254
      %1258 = vset.pattern.permute.xlu0 0
      %1259 = vperm.xlu0 %1258, %v1237
      %v1260 = vpop.permute.xlu0 %1259
      %1263 = vset.pattern.permute.xlu0 0
      %1264 = vperm.xlu0 %1263, %v1238
      %v1265 = vpop.permute.xlu0 %1264
      %1268 = vset.pattern.permute.xlu0 0
      %1269 = vperm.xlu0 %1268, %v1239
      %v1270 = vpop.permute.xlu0 %1269
      %1273 = vset.pattern.permute.xlu0 0
      %1274 = vperm.xlu0 %1273, %v1240
      %v1275 = vpop.permute.xlu0 %1274
      %1278 = vset.pattern.permute.xlu0 0
      %1279 = vperm.xlu0 %1278, %v1241
      %v1280 = vpop.permute.xlu0 %1279
      %1283 = vset.pattern.permute.xlu0 0
      %1284 = vperm.xlu0 %1283, %v1242
      %v1285 = vpop.permute.xlu0 %1284
      %1288 = vset.pattern.permute.xlu0 0
      %1289 = vperm.xlu0 %1288, %v1243
      %v1290 = vpop.permute.xlu0 %1289
      %1293 = vset.pattern.permute.xlu0 0
      %1294 = vperm.xlu0 %1293, %v1244
      %v1295 = vpop.permute.xlu0 %1294
      %1298 = vset.pattern.permute.xlu0 0
      %1299 = vperm.xlu0 %1298, %v1245
      %v1300 = vpop.permute.xlu0 %1299
      %1303 = vset.pattern.permute.xlu0 0
      %1304 = vperm.xlu0 %1303, %v1246
      %v1305 = vpop.permute.xlu0 %1304
      %v1307 = vadd.f32 %v1211, %v1250
      %v1308 = vadd.f32 %v1212, %v1250
      %v1309 = vadd.f32 %v1213, %v1255
      %v1310 = vadd.f32 %v1214, %v1255
      %v1311 = vadd.f32 %v1215, %v1260
      %v1312 = vadd.f32 %v1216, %v1260
      %v1313 = vadd.f32 %v1217, %v1265
      %v1314 = vadd.f32 %v1218, %v1265
      %v1315 = vadd.f32 %v1219, %v1270
      %v1316 = vadd.f32 %v1220, %v1270
      %v1317 = vadd.f32 %v1221, %v1275
      %v1318 = vadd.f32 %v1222, %v1275
      %v1319 = vadd.f32 %v1223, %v1280
      %v1320 = vadd.f32 %v1224, %v1280
      %v1321 = vadd.f32 %v1225, %v1285
      %v1322 = vadd.f32 %v1226, %v1285
      %v1323 = vadd.f32 %v1227, %v1290
      %v1324 = vadd.f32 %v1228, %v1290
      %v1325 = vadd.f32 %v1229, %v1295
      %v1326 = vadd.f32 %v1230, %v1295
      %v1327 = vadd.f32 %v1231, %v1300
      %v1328 = vadd.f32 %v1232, %v1300
      %v1329 = vadd.f32 %v1233, %v1305
      %v1330 = vadd.f32 %v1234, %v1305
      %v1331 = vmax.f32 %v1307, 0.0
      %v1332 = vmax.f32 %v1308, 0.0
      %v1333 = vmax.f32 %v1309, 0.0
      %v1334 = vmax.f32 %v1310, 0.0
      %v1335 = vmax.f32 %v1311, 0.0
      %v1336 = vmax.f32 %v1312, 0.0
      %v1337 = vmax.f32 %v1313, 0.0
      %v1338 = vmax.f32 %v1314, 0.0
      %v1339 = vmax.f32 %v1315, 0.0
      %v1340 = vmax.f32 %v1316, 0.0
      %v1341 = vmax.f32 %v1317, 0.0
      %v1342 = vmax.f32 %v1318, 0.0
      %v1343 = vmax.f32 %v1319, 0.0
      %v1344 = vmax.f32 %v1320, 0.0
      %v1345 = vmax.f32 %v1321, 0.0
      %v1346 = vmax.f32 %v1322, 0.0
      %v1347 = vmax.f32 %v1323, 0.0
      %v1348 = vmax.f32 %v1324, 0.0
      %v1349 = vmax.f32 %v1325, 0.0
      %v1350 = vmax.f32 %v1326, 0.0
      %v1351 = vmax.f32 %v1327, 0.0
      %v1352 = vmax.f32 %v1328, 0.0
      %v1353 = vmax.f32 %v1329, 0.0
      %v1354 = vmax.f32 %v1330, 0.0
      %v1355 = vld [vmem:[%s4] sm:$0xff]
      %v1356 = vld [vmem:[%s4 + $0x8] sm:$0xf]
      %vm1357 = vcmask 785408
      %v1359 = vsel %vm1357, %v1355, 0
      %v1362 = vsel %vm1357, %v1356, 0
      %1364 = vmatpush.msra.mxu0 0.0
      %1365 = vmatpush.msra.mxu0 0.0
      %1366 = vmatpush.msra.mxu0 0.0
      %1367 = vmatpush.msra.mxu0 0.0
      %1368 = vmatpush.msra.mxu0 %v1353
      %1369 = vmatpush.msra.mxu0 %v1351
      %1370 = vmatpush.msra.mxu0 %v1349
      %1371 = vmatpush.msra.mxu0 %v1347
      %1372 = vmatpush.msra.mxu0 %v1345
      %1373 = vmatpush.msra.mxu0 %v1343
      %1374 = vmatpush.msra.mxu0 %v1341
      %1375 = vmatpush.msra.mxu0 %v1339
      %1376 = vmatpush.msra.mxu0 %v1337
      %1377 = vmatpush.msra.mxu0 %v1335
      %1378 = vmatpush.msra.mxu0 %v1333
      %1379 = vmatpush.msra.mxu0 %v1331
      %1380 = vmatmul.f32.gmra.mxu0 %v1359
      %v1381 = vpop.f32.mrf.mxu0
      %v1382 = vadd.f32 0.0, %v1381
      %1383 = vmatmul.f32.gmra.mxu0 %v1362
      %v1384 = vpop.f32.mrf.mxu0
      %v1385 = vadd.f32 0.0, %v1384
      %1386 = vdwg.mxu0
      %1387 = vmatpush.msra.mxu0 0.0
      %1388 = vmatpush.msra.mxu0 0.0
      %1389 = vmatpush.msra.mxu0 0.0
      %1390 = vmatpush.msra.mxu0 0.0
      %1391 = vmatpush.msra.mxu0 %v1354
      %1392 = vmatpush.msra.mxu0 %v1352
      %1393 = vmatpush.msra.mxu0 %v1350
      %1394 = vmatpush.msra.mxu0 %v1348
      %1395 = vmatpush.msra.mxu0 %v1346
      %1396 = vmatpush.msra.mxu0 %v1344
      %1397 = vmatpush.msra.mxu0 %v1342
      %1398 = vmatpush.msra.mxu0 %v1340
      %1399 = vmatpush.msra.mxu0 %v1338
      %1400 = vmatpush.msra.mxu0 %v1336
      %1401 = vmatpush.msra.mxu0 %v1334
      %1402 = vmatpush.msra.mxu0 %v1332
      %1403 = vmatmul.f32.gmra.mxu0 %v1359
      %v1404 = vpop.f32.mrf.mxu0
      %v1405 = vadd.f32 0.0, %v1404
      %1406 = vmatmul.f32.gmra.mxu0 %v1362
      %v1407 = vpop.f32.mrf.mxu0
      %v1408 = vadd.f32 0.0, %v1407
      %1409 = vdwg.mxu0
      %v1411 = vperm.slane %v246, 0
      %v1412 = vperm.slane %v246, 1
      %v1415 = vmul.f32 %v1382, %v1411
      %v1416 = vmul.f32 %v1405, %v1412
      %v1417 = vmul.f32 %v1385, %v1411
      %v1418 = vmul.f32 %v1408, %v1412
      %v1419 = vadd.f32 %v242, %v1415
      %v1420 = vadd.f32 %v243, %v1416
      %v1421 = vadd.f32 %v244, %v1417
      %v1422 = vadd.f32 %v245, %v1418
      %1423 = vst [vmem:[%s241] sm:$0xff] %v1419
      %1424 = vst [vmem:[%s241 + $0x8] sm:$0xff] %v1420
      %1425 = vst [vmem:[%s241 + $0x10] sm:$0xf] %v1421
      %1426 = vst [vmem:[%s241 + $0x18] sm:$0xf] %v1422
      %p1427 = scmp.lt.s32.totalorder %s16, 1
      %s1428 = scalar_select %p1427, %s16, 1
      %s1429 = smul.addr %s1428, 4
      %s1430 = smul.addr %s1429, 8
      %s1431 = scalar_lea.vmem %s5, %s1430
      // Predicated region
      $region41: #{tpu_custom_call.1} parent=39 // pred_check
        %p1432 = pneg %p149
      $region42: #{tpu_custom_call.1} parent=39 // pred_check_branch
        %1434 = sbr.rel (%p1432) target = $region44
      $region43: #{tpu_custom_call.1} parent=39 // pred_region
        _
      $region44: #{tpu_custom_call.1} parent=39 // pred_fallthru
        _
    $region40: #{tpu_custom_call.1} parent=5 // pred_fallthru
      _
    %p1435 = scmp.le.s32.totalorder 2, %s11
    // Predicated region
    $region45: #{tpu_custom_call.1} parent=5 // pred_check
      %p1436 = pneg %p1435
    $region46: #{tpu_custom_call.1} parent=5 // pred_check_branch
      %1438 = sbr.rel (%p1436) target = $region48
    $region47: #{tpu_custom_call.1} parent=5 // pred_region
      %s1439 = ssub.s32 %s11, 2
      // Predicated region
      $region49: #{tpu_custom_call.1} parent=47 // pred_check
        %p1440 = pneg %p155
      $region50: #{tpu_custom_call.1} parent=47 // pred_check_branch
        %1442 = sbr.rel (%p1440) target = $region52
      $region51: #{tpu_custom_call.1} parent=47 // pred_region
        %p1443 = scmp.lt.s32.totalorder %s17, 1
        %s1444 = scalar_select %p1443, %s17, 1
        %s1445 = smul.addr %s1444, 4
        %s1446 = smul.addr %s1445, 8
        %s1447 = scalar_lea.vmem %s5, %s1446
      $region52: #{tpu_custom_call.1} parent=47 // pred_fallthru
        _
    $region48: #{tpu_custom_call.1} parent=5 // pred_fallthru
      _
  $region6: #{tpu_custom_call.1} parent=0 // loop_footer
    %s15 = sadd.s32 1, %s11
  $region7: #{tpu_custom_call.1} parent=0 // loop_footer_branch
    %10 = sbr.rel target = $region3
  $region8: #{tpu_custom_call.1} parent=0 // loop_exit
    _

</llo_original>
